<compile_context>
chip_gen: v5e
topology: v5e:2x2
jax: 0.10.0
libtpu: 0.0.40
codegen_flags: <defaults>
</compile_context>

<pallas_src>
import functools

import jax
import jax.numpy as jnp
from jax import lax
from jax.experimental import pallas as pl
from jax.experimental.pallas import tpu as pltpu


def leaky_relu(x, slope=0.1):
    return jnp.where(x >= 0, x, slope * x)


def _pick_tile(n, target, align=256):
    """Largest divisor of n that is <= target and a multiple of `align`;
    falls back to the full dimension (always a legal block size)."""
    if n <= target:
        return n
    t = (min(target, n) // align) * align
    while t >= align:
        if n % t == 0:
            return t
        t -= align
    return n


# ------------------------- per-rating projection ---------------------------
# h_all = (feat * cj) @ concat_r(W_r)   -> [N, R*H]   (stored bf16)
def project_kernel(feat_ref, cj_ref, w_ref, h_ref):
    scaled = (feat_ref[...] * cj_ref[...]).astype(jnp.bfloat16)
    h_ref[...] = jnp.dot(scaled, w_ref[...],
                         preferred_element_type=jnp.float32).astype(h_ref.dtype)


def project(feat, cj, w_cat, *, row_tile):
    N, D = feat.shape
    RH = w_cat.shape[1]
    assert N % row_tile == 0
    grid_spec = pltpu.PrefetchScalarGridSpec(
        num_scalar_prefetch=0,
        grid=(N // row_tile,),
        in_specs=[
            pl.BlockSpec((row_tile, D), lambda i: (i, 0)),
            pl.BlockSpec((row_tile, 1), lambda i: (i, 0)),
            pl.BlockSpec((D, RH), lambda i: (0, 0)),
        ],
        out_specs=pl.BlockSpec((row_tile, RH), lambda i: (i, 0)),
    )
    return pl.pallas_call(
        project_kernel,
        out_shape=jax.ShapeDtypeStruct((N, RH), jnp.bfloat16),
        grid_spec=grid_spec,
        compiler_params=pltpu.CompilerParams(dimension_semantics=("parallel",)),
    )(feat, cj, w_cat)


# --------------------- aggregation + output FC kernel -----------------------
# grid = (out_tiles [parallel], reduction tiles [arbitrary]); R unrolled in body.
#   acc[out_tile] += sum_r A[r, out_tile, red_tile] @ h[red_tile, r*H:(r+1)*H]
# finalize: out = LeakyReLU(acc * ci) @ W_fc + b_fc
def agg_fc_kernel(a_ref, h_ref, ci_ref, wfc_ref, bfc_ref, out_ref, acc_ref,
                  *, num_ratings, hidden):
    j = pl.program_id(1)

    @pl.when(j == 0)
    def _():
        acc_ref[...] = jnp.zeros_like(acc_ref)

    h = h_ref[...]                                    # (red_tile, R*H) bf16
    acc = acc_ref[...]
    for r in range(num_ratings):                      # static unroll (R folded in)
        a_r = a_ref[r].astype(jnp.float32).astype(jnp.bfloat16)   # int8 0/1 -> bf16
        acc = acc + jnp.dot(a_r, h[:, r * hidden:(r + 1) * hidden],
                            preferred_element_type=jnp.float32)
    acc_ref[...] = acc

    @pl.when(j == pl.num_programs(1) - 1)
    def _():
        agg = leaky_relu(acc_ref[...] * ci_ref[...]).astype(jnp.bfloat16)  # agg_act
        out_ref[...] = (jnp.dot(agg, wfc_ref[...],
                                preferred_element_type=jnp.float32)
                        + bfc_ref[...])


def gcmc_aggregate(A, h_all, ci, w_fc, b_fc, *, out_tile, red_tile):
    R, N_out, N_red = A.shape
    H, O = w_fc.shape
    RH = h_all.shape[1]
    assert RH == R * H
    assert N_out % out_tile == 0 and N_red % red_tile == 0

    grid_spec = pltpu.PrefetchScalarGridSpec(
        num_scalar_prefetch=0,
        grid=(N_out // out_tile, N_red // red_tile),
        in_specs=[
            pl.BlockSpec((R, out_tile, red_tile), lambda i, j: (0, i, j)),  # A tile
            pl.BlockSpec((red_tile, RH), lambda i, j: (j, 0)),              # all-rating H
            pl.BlockSpec((out_tile, 1), lambda i, j: (i, 0)),               # ci (out rows)
            pl.BlockSpec((H, O), lambda i, j: (0, 0)),                      # W_fc (bf16)
            pl.BlockSpec((1, O), lambda i, j: (0, 0)),                      # b_fc
        ],
        out_specs=pl.BlockSpec((out_tile, O), lambda i, j: (i, 0)),
        scratch_shapes=[pltpu.VMEM((out_tile, H), jnp.float32)],
    )
    return pl.pallas_call(
        functools.partial(agg_fc_kernel, num_ratings=R, hidden=H),
        out_shape=jax.ShapeDtypeStruct((N_out, O), jnp.float32),
        grid_spec=grid_spec,
        compiler_params=pltpu.CompilerParams(
            dimension_semantics=("parallel", "arbitrary"),
            vmem_limit_bytes=48 * 1024 * 1024),
    )(A, h_all, ci, w_fc, b_fc)


# ----------------------------- decoder kernel ------------------------------
# Edge gather fused in-kernel: one-hot (exact 0/1) MXU gather against the
# VMEM-resident node tables, then one wide bf16 matmul ue @ concat_b(P_b).
def decoder_kernel(uid_ref, iid_ref, uo_ref, mo_ref, pcat_ref, wc_ref, out_ref,
                   *, num_basis, out_units):
    T = uid_ref.shape[0]
    U = uo_ref.shape[0]
    M = mo_ref.shape[0]
    onehot_u = jnp.where(
        uid_ref[...] == lax.broadcasted_iota(jnp.int32, (T, U), 1),
        1.0, 0.0).astype(jnp.bfloat16)
    onehot_i = jnp.where(
        iid_ref[...] == lax.broadcasted_iota(jnp.int32, (T, M), 1),
        1.0, 0.0).astype(jnp.bfloat16)
    ue = jnp.dot(onehot_u, uo_ref[...], preferred_element_type=jnp.float32)   # (T, O)
    ie = jnp.dot(onehot_i, mo_ref[...], preferred_element_type=jnp.float32)   # (T, O)
    ub_all = jnp.dot(ue.astype(jnp.bfloat16), pcat_ref[...],
                     preferred_element_type=jnp.float32)                      # (T, B*O)
    wc = wc_ref[...]
    acc = jnp.zeros(out_ref.shape, jnp.float32)
    for b in range(num_basis):                          # small static unroll
        s_b = jnp.sum(ub_all[:, b * out_units:(b + 1) * out_units] * ie,
                      axis=-1, keepdims=True)           # (T, 1)
        acc = acc + s_b * wc[b:b + 1, :]                # (T, C)
    out_ref[...] = acc


def bi_decoder(u_ids, i_ids, user_out, movie_out, P_cat, Wc, *, edge_tile):
    E = u_ids.shape[0]
    U, O = user_out.shape
    M = movie_out.shape[0]
    B, C = Wc.shape
    assert E % edge_tile == 0
    grid_spec = pltpu.PrefetchScalarGridSpec(
        num_scalar_prefetch=0,
        grid=(E // edge_tile,),
        in_specs=[
            pl.BlockSpec((edge_tile, 1), lambda e: (e, 0)),   # u ids
            pl.BlockSpec((edge_tile, 1), lambda e: (e, 0)),   # i ids
            pl.BlockSpec((U, O), lambda e: (0, 0)),           # user table (resident)
            pl.BlockSpec((M, O), lambda e: (0, 0)),           # movie table (resident)
            pl.BlockSpec((O, B * O), lambda e: (0, 0)),       # concat(P_b)
            pl.BlockSpec((B, C), lambda e: (0, 0)),           # Wc
        ],
        out_specs=pl.BlockSpec((edge_tile, C), lambda e: (e, 0)),
    )
    return pl.pallas_call(
        functools.partial(decoder_kernel, num_basis=B, out_units=O),
        out_shape=jax.ShapeDtypeStruct((E, C), jnp.float32),
        grid_spec=grid_spec,
        compiler_params=pltpu.CompilerParams(dimension_semantics=("parallel",)),
    )(u_ids, i_ids, user_out, movie_out, P_cat, Wc)


# --------------------------------- wrapper ---------------------------------
def net_forward(params, graphs, ufeat, ifeat, *,
                agg_out_target=512, agg_red_target=1024,
                proj_row_target=512, edge_tile_target=1024):
    A, u_ids, i_ids, cj_u, ci_u, cj_m, ci_m = graphs
    R, U, M = A.shape
    H = params["W_r"].shape[2]
    O = params["W_ufc"].shape[1]
    B = params["Ps"].shape[0]

    # 0/1 mask adjacency stored at 1 byte/element (int8, exact); transposed copy
    # pre-built once so BOTH passes contract on LHS axis 1 (no in-kernel transpose).
    A_u = A.astype(jnp.int8)                              # [R, U, M]  users <- movies
    A_m = jnp.transpose(A, (0, 2, 1)).astype(jnp.int8)    # [R, M, U]  movies <- users

    # Hoisted per-rating projections: (X @ W_r) * cj == (X * cj) @ W_r;
    # all R projections fused into one lane-dense [D, R*H] bf16 matmul.
    w_r_cat = jnp.transpose(params["W_r"], (1, 0, 2)).reshape(
        params["W_r"].shape[1], R * H).astype(jnp.bfloat16)
    w_rev_cat = jnp.transpose(params["W_rev"], (1, 0, 2)).reshape(
        params["W_rev"].shape[1], R * H).astype(jnp.bfloat16)
    hu_all = project(ufeat, cj_u, w_r_cat, row_tile=_pick_tile(U, proj_row_target))
    hm_all = project(ifeat, cj_m, w_rev_cat, row_tile=_pick_tile(M, proj_row_target))

    user_out = gcmc_aggregate(
        A_u, hm_all, ci_u, params["W_ufc"].astype(jnp.bfloat16), params["b_ufc"],
        out_tile=_pick_tile(U, agg_out_target),
        red_tile=_pick_tile(M, agg_red_target))
    movie_out = gcmc_aggregate(
        A_m, hu_all, ci_m, params["W_ifc"].astype(jnp.bfloat16), params["b_ifc"],
        out_tile=_pick_tile(M, agg_out_target),
        red_tile=_pick_tile(U, agg_red_target))

    # BiDecoder with the edge gather fused in-kernel.
    # TODO(synk): for node tables too large for VMEM, switch the one-hot MXU
    # gather to a scalar-prefetch + manual-DMA row gather.
    E = u_ids.shape[0]
    assert E > 0
    edge_pad = 256
    Ep = ((E + edge_pad - 1) // edge_pad) * edge_pad
    u_ids_p = jnp.pad(u_ids.astype(jnp.int32), (0, Ep - E)).reshape(Ep, 1)
    i_ids_p = jnp.pad(i_ids.astype(jnp.int32), (0, Ep - E)).reshape(Ep, 1)
    P_cat = jnp.transpose(params["Ps"], (1, 0, 2)).reshape(
        O, B * O).astype(jnp.bfloat16)
    pred = bi_decoder(u_ids_p, i_ids_p,
                      user_out.astype(jnp.bfloat16), movie_out.astype(jnp.bfloat16),
                      P_cat, params["Wc"],
                      edge_tile=_pick_tile(Ep, edge_tile_target))
    return pred[:E]


# ------------------------------ pure-JAX reference --------------------------
def net_reference(params, graphs, ufeat, ifeat):
    A, u_ids, i_ids, cj_u, ci_u, cj_m, ci_m = graphs
    A = A.astype(jnp.float32)
    R, U, M = A.shape
    H = params["W_r"].shape[2]
    accu = jnp.zeros((U, H), jnp.float32)
    accm = jnp.zeros((M, H), jnp.float32)
    for r in range(R):
        hu = (ufeat @ params["W_r"][r]) * cj_u
        accm = accm + (A[r].T @ hu) * ci_m
        hm = (ifeat @ params["W_rev"][r]) * cj_m
        accu = accu + (A[r] @ hm) * ci_u
    uo = leaky_relu(accu) @ params["W_ufc"] + params["b_ufc"]
    mo = leaky_relu(accm) @ params["W_ifc"] + params["b_ifc"]
    ue = uo[u_ids]
    ie = mo[i_ids]
    B = params["Ps"].shape[0]
    S = jnp.stack([jnp.sum((ue @ params["Ps"][b]) * ie, axis=-1)
                   for b in range(B)], axis=-1)
    return S @ params["Wc"]


if __name__ == "__main__":
    # small synthetic problem, lane-dense hidden/output widths
    U, M = 64, 256                # num users / num movies
    R = 3                         # len(rating_vals) -> num_classes
    Du, Dm = 32, 32               # src_in_units / dst_in_units
    H = 128                       # gcn_agg_units (agg_accum='sum')
    O = 128                       # gcn_out_units
    B = 2                         # gen_r_num_basis_func
    E = 500                       # number of decoder (user, movie) pairs

    key = jax.random.PRNGKey(0)
    ks = jax.random.split(key, 12)

    params = {
        "W_r":   0.1 * jax.random.normal(ks[0], (R, Du, H), jnp.float32),
        "W_rev": 0.1 * jax.random.normal(ks[1], (R, Dm, H), jnp.float32),
        "W_ufc": 0.1 * jax.random.normal(ks[2], (H, O), jnp.float32),
        "b_ufc": 0.1 * jax.random.normal(ks[3], (1, O), jnp.float32),
        "W_ifc": 0.1 * jax.random.normal(ks[4], (H, O), jnp.float32),
        "b_ifc": 0.1 * jax.random.normal(ks[5], (1, O), jnp.float32),
        "Ps":    0.1 * jax.random.normal(ks[6], (B, O, O), jnp.float32),
        "Wc":    0.1 * jax.random.normal(ks[7], (B, R), jnp.float32),
    }

    ufeat = jax.random.normal(ks[8], (U, Du), jnp.float32)
    ifeat = jax.random.normal(ks[9], (M, Dm), jnp.float32)

    # enc_graph: random rating in {0..R} per (u, m); 0 = no edge
    ratings = jax.random.randint(ks[10], (U, M), 0, R + 1)
    A = jnp.stack([(ratings == (r + 1)).astype(jnp.float32) for r in range(R)])

    deg_u = jnp.sum((ratings > 0).astype(jnp.float32), axis=1, keepdims=True)   # [U,1]
    deg_m = jnp.sum((ratings > 0).astype(jnp.float32), axis=0)[:, None]         # [M,1]
    cj_u = ci_u = jnp.where(deg_u > 0, 1.0 / jnp.sqrt(jnp.maximum(deg_u, 1.0)), 0.0)
    cj_m = ci_m = jnp.where(deg_m > 0, 1.0 / jnp.sqrt(jnp.maximum(deg_m, 1.0)), 0.0)

    # dec_graph: E (user, movie) pairs to score
    u_ids = jax.random.randint(ks[11], (E,), 0, U)
    i_ids = jax.random.randint(jax.random.fold_in(key, 99), (E,), 0, M)

    graphs = (A, u_ids, i_ids, cj_u, ci_u, cj_m, ci_m)

    pred = net_forward(params, graphs, ufeat, ifeat)
    pred = jax.block_until_ready(pred)
    assert pred.shape == (E, R), pred.shape

    ref = net_reference(params, graphs, ufeat, ifeat)
    if not jnp.allclose(pred, ref, rtol=5e-2, atol=5e-2):
        raise AssertionError("Pallas output does not match reference")

    print("KERNEL_OK")
</pallas_src>

<mosaic_0001>
module attributes {stable_mosaic.version = 11 : i64} {
  func.func @project_kernel(%arg0: i32, %arg1: memref<64x32xf32, #tpu.memory_space<vmem>>, %arg2: memref<64x1xf32, #tpu.memory_space<vmem>>, %arg3: memref<32x384xbf16, #tpu.memory_space<vmem>>, %arg4: memref<64x384xbf16, #tpu.memory_space<vmem>>) attributes {dimension_semantics = [#tpu.dimension_semantics<parallel>], iteration_bounds = array<i64: 1>, scalar_prefetch = 0 : i64, scratch_operands = 0 : i64, tpu.core_type = #tpu.core_type<tc>, window_params = [{transform_indices = @transform_0, window_bounds = array<i64: 64, 32>}, {transform_indices = @transform_1, window_bounds = array<i64: 64, 1>}, {pipeline_mode = #tpu.pipeline_mode<synchronous>, transform_indices = @transform_2, window_bounds = array<i64: 32, 384>}, {transform_indices = @transform_3, window_bounds = array<i64: 64, 384>}]} {
    %c0 = arith.constant 0 : index
    %c0_0 = arith.constant 0 : index
    %0 = vector.load %arg1[%c0, %c0_0] : memref<64x32xf32, #tpu.memory_space<vmem>>, vector<64x32xf32>
    %c0_1 = arith.constant 0 : index
    %c0_2 = arith.constant 0 : index
    %1 = vector.load %arg2[%c0_1, %c0_2] : memref<64x1xf32, #tpu.memory_space<vmem>>, vector<64x1xf32>
    %2 = vector.broadcast %1 : vector<64x1xf32> to vector<64x32xf32>
    %3 = arith.mulf %0, %2 : vector<64x32xf32>
    %4 = arith.truncf %3 : vector<64x32xf32> to vector<64x32xbf16>
    %c0_3 = arith.constant 0 : index
    %c0_4 = arith.constant 0 : index
    %5 = vector.load %arg3[%c0_3, %c0_4] : memref<32x384xbf16, #tpu.memory_space<vmem>>, vector<32x384xbf16>
    %cst = arith.constant dense<0.000000e+00> : vector<64x384xf32>
    %6 = tpu.matmul %4, %5, %cst {dimension_numbers = #tpu.dot_dimension_numbers<[1], [0], [0], [1], [0, 0, 1, 1], [], []>} : vector<64x32xbf16>, vector<32x384xbf16>, vector<64x384xf32> -> vector<64x384xf32>
    %7 = arith.truncf %6 : vector<64x384xf32> to vector<64x384xbf16>
    %c0_5 = arith.constant 0 : index
    %c0_6 = arith.constant 0 : index
    %8 = vector.load %arg4[%c0_5, %c0_6] : memref<64x384xbf16, #tpu.memory_space<vmem>>, vector<64x384xbf16>
    tpu.vector_store %arg4[%c0_5, %c0_6], %7 {strides = array<i32>} : memref<64x384xbf16, #tpu.memory_space<vmem>>, vector<64x384xbf16>,
    return
  }
  func.func @transform_0(%arg0: i32) -> (i32, i32) {
    %c0_i32 = arith.constant 0 : i32
    %c0_i32_0 = arith.constant 0 : i32
    return %arg0, %c0_i32 : i32, i32
  }
  func.func @transform_1(%arg0: i32) -> (i32, i32) {
    %c0_i32 = arith.constant 0 : i32
    %c0_i32_0 = arith.constant 0 : i32
    return %arg0, %c0_i32 : i32, i32
  }
  func.func @transform_2(%arg0: i32) -> (i32, i32) {
    %c0_i32 = arith.constant 0 : i32
    %c0_i32_0 = arith.constant 0 : i32
    %c0_i32_1 = arith.constant 0 : i32
    return %c0_i32, %c0_i32_0 : i32, i32
  }
  func.func @transform_3(%arg0: i32) -> (i32, i32) {
    %c0_i32 = arith.constant 0 : i32
    %c0_i32_0 = arith.constant 0 : i32
    return %arg0, %c0_i32 : i32, i32
  }
}

</mosaic_0001>

<llo_original>
// kernel: tpu_custom_call.1
$region0: #{tpu_custom_call.1}
  #allocation0 [shape = 'u32[]', space=smem, size = 0x4, offset = 0x4, fixed_abs, tag = 'smem constant byte address 0x4 - core index']
  #allocation1 [shape = 'u32[72,128]{1,0:T(1,128)}', space=vmem, size = 0x9000, scoped, tag = 'internal scratch']
  %s0 = inlined_call_operand.vmem [shape: f32[64,32], index: 0, kind: input, shape index: {}]
  %s1 = inlined_call_operand.vmem [shape: f32[64,1], index: 1, kind: input, shape index: {}]
  %s2 = inlined_call_operand.vmem [shape: bf16[32,384], index: 2, kind: input, shape index: {}]
  %s3 = inlined_call_operand.hbm [shape: bf16[64,384], index: 3, kind: output, shape index: {}]
  %s4 = sld [smem:[#allocation0]]
  $region22: #{tpu_custom_call.1} parent=0
    _
  %s6 = ssub.s32 1, %s4
  %s7 = scalar_select 0, %s6, %s4
  $region1: #{tpu_custom_call.1} parent=0
    #allocation2 [shape = 'u8[49152]{0}', space=vmem, size = 0xc000, scoped, tag = 'output window, operand 0, single buffered']
    #allocation3 [shape = 's32[1]{0}', space=sflag, size = 0x4, scoped, tag = 'scoped memory for tpu_custom_call.1']
    %8 = vsyncpa [#allocation3], 0
    // Predicated region
    $region2: #{tpu_custom_call.1} parent=1 // pred_check
      _
    $region3: #{tpu_custom_call.1} parent=1 // pred_check_branch
      %10 = sbr.rel (0) target = $region5
    $region4: #{tpu_custom_call.1} parent=1 // pred_region
      _
    $region5: #{tpu_custom_call.1} parent=1 // pred_fallthru
      _
    // Predicated region
    $region6: #{tpu_custom_call.1} parent=1 // pred_check
      _
    $region7: #{tpu_custom_call.1} parent=1 // pred_check_branch
      %12 = sbr.rel (0) target = $region9
    $region8: #{tpu_custom_call.1} parent=1 // pred_region
      _
    $region9: #{tpu_custom_call.1} parent=1 // pred_fallthru
      _
    // Predicated region
    $region10: #{tpu_custom_call.1} parent=1 // pred_check
      _
    $region11: #{tpu_custom_call.1} parent=1 // pred_check_branch
      %14 = sbr.rel (0) target = $region13
    $region12: #{tpu_custom_call.1} parent=1 // pred_region
      _
    $region13: #{tpu_custom_call.1} parent=1 // pred_fallthru
      _
    %v16 = vld [vmem:[%s0] sm:$0xff]
    %v17 = vld [vmem:[%s0 + $0x8] sm:$0xff]
    %v18 = vld [vmem:[%s0 + $0x10] sm:$0xff]
    %v19 = vld [vmem:[%s0 + $0x18] sm:$0xff]
    %v20 = vld [vmem:[%s0 + $0x20] sm:$0xff]
    %v21 = vld [vmem:[%s0 + $0x28] sm:$0xff]
    %v22 = vld [vmem:[%s0 + $0x30] sm:$0xff]
    %v23 = vld [vmem:[%s0 + $0x38] sm:$0xff]
    %v24 = vld [vmem:[%s1] sm:$0xff]
    %v25 = vld [vmem:[%s1 + $0x8] sm:$0xff]
    %v26 = vld [vmem:[%s1 + $0x10] sm:$0xff]
    %v27 = vld [vmem:[%s1 + $0x18] sm:$0xff]
    %v28 = vld [vmem:[%s1 + $0x20] sm:$0xff]
    %v29 = vld [vmem:[%s1 + $0x28] sm:$0xff]
    %v30 = vld [vmem:[%s1 + $0x30] sm:$0xff]
    %v31 = vld [vmem:[%s1 + $0x38] sm:$0xff]
    %33 = vset.pattern.permute.xlu0 0
    %34 = vperm.xlu0 %33, %v24
    %v35 = vpop.permute.xlu0 %34
    %38 = vset.pattern.permute.xlu0 0
    %39 = vperm.xlu0 %38, %v25
    %v40 = vpop.permute.xlu0 %39
    %43 = vset.pattern.permute.xlu0 0
    %44 = vperm.xlu0 %43, %v26
    %v45 = vpop.permute.xlu0 %44
    %48 = vset.pattern.permute.xlu0 0
    %49 = vperm.xlu0 %48, %v27
    %v50 = vpop.permute.xlu0 %49
    %53 = vset.pattern.permute.xlu0 0
    %54 = vperm.xlu0 %53, %v28
    %v55 = vpop.permute.xlu0 %54
    %58 = vset.pattern.permute.xlu0 0
    %59 = vperm.xlu0 %58, %v29
    %v60 = vpop.permute.xlu0 %59
    %63 = vset.pattern.permute.xlu0 0
    %64 = vperm.xlu0 %63, %v30
    %v65 = vpop.permute.xlu0 %64
    %68 = vset.pattern.permute.xlu0 0
    %69 = vperm.xlu0 %68, %v31
    %v70 = vpop.permute.xlu0 %69
    %v72 = vmul.f32 %v16, %v35
    %v73 = vmul.f32 %v17, %v40
    %v74 = vmul.f32 %v18, %v45
    %v75 = vmul.f32 %v19, %v50
    %v76 = vmul.f32 %v20, %v55
    %v77 = vmul.f32 %v21, %v60
    %v78 = vmul.f32 %v22, %v65
    %v79 = vmul.f32 %v23, %v70
    %v80 = vpack.c.bf16 %v73, %v72
    %v81 = vpack.c.bf16 %v75, %v74
    %v82 = vpack.c.bf16 %v77, %v76
    %v83 = vpack.c.bf16 %v79, %v78
    %v84 = vld [vmem:[%s2] sm:$0xff]
    %v85 = vld [vmem:[%s2 + $0x8] sm:$0xf]
    %v86 = vld [vmem:[%s2 + $0xc] sm:$0xff]
    %v87 = vld [vmem:[%s2 + $0x14] sm:$0xf]
    %v88 = vld [vmem:[%s2 + $0x18] sm:$0xff]
    %v89 = vld [vmem:[%s2 + $0x20] sm:$0xf]
    %v90 = vld [vmem:[%s2 + $0x24] sm:$0xff]
    %v91 = vld [vmem:[%s2 + $0x2c] sm:$0xf]
    %v100 = vunpack.c.l.b16 %v84
    %v101 = vunpack.c.h.b16 %v84
    %v102 = vunpack.c.l.b16 %v85
    %v103 = vunpack.c.l.b16 %v86
    %v104 = vunpack.c.h.b16 %v86
    %v105 = vunpack.c.l.b16 %v87
    %v106 = vunpack.c.l.b16 %v88
    %v107 = vunpack.c.h.b16 %v88
    %v108 = vunpack.c.l.b16 %v89
    %v109 = vunpack.c.l.b16 %v90
    %v110 = vunpack.c.h.b16 %v90
    %v111 = vunpack.c.l.b16 %v91
    %v112 = vpack.c.b16 %v103, %v100
    %v113 = vpack.c.b16 %v104, %v101
    %v114 = vpack.c.b16 %v105, %v102
    %v115 = vpack.c.b16 %v109, %v106
    %v116 = vpack.c.b16 %v110, %v107
    %v117 = vpack.c.b16 %v111, %v108
    %vm124 = vcmask 261120
    %v126 = vsel %vm124, %v80, 0
    %v129 = vsel %vm124, %v81, 0
    %v132 = vsel %vm124, %v82, 0
    %v135 = vsel %vm124, %v83, 0
    %137 = vmatpush.bf16.msra.mxu0 0
    %138 = vmatpush.bf16.msra.mxu0 0
    %139 = vmatpush.bf16.msra.mxu0 0
    %140 = vmatpush.bf16.msra.mxu0 0
    %141 = vmatpush.bf16.msra.mxu0 0
    %142 = vmatpush.bf16.msra.mxu0 0
    %143 = vmatpush.bf16.msra.mxu0 %v115
    %144 = vmatpush.bf16.msra.mxu0 %v112
    %145 = vmatmul.bf16.gmra.mxu0 %v126
    %v146 = vpop.f32.mrf.mxu0
    %v147 = vadd.f32 0.0, %v146
    %v148 = vpop.f32.mrf.mxu0
    %v149 = vadd.f32 0.0, %v148
    %150 = vmatmul.bf16.gmra.mxu0 %v129
    %v151 = vpop.f32.mrf.mxu0
    %v152 = vadd.f32 0.0, %v151
    %v153 = vpop.f32.mrf.mxu0
    %v154 = vadd.f32 0.0, %v153
    %155 = vmatmul.bf16.gmra.mxu0 %v132
    %v156 = vpop.f32.mrf.mxu0
    %v157 = vadd.f32 0.0, %v156
    %v158 = vpop.f32.mrf.mxu0
    %v159 = vadd.f32 0.0, %v158
    %160 = vmatmul.bf16.gmra.mxu0 %v135
    %v161 = vpop.f32.mrf.mxu0
    %v162 = vadd.f32 0.0, %v161
    %v163 = vpop.f32.mrf.mxu0
    %v164 = vadd.f32 0.0, %v163
    %165 = vdwg.mxu0
    %166 = vmatpush.bf16.msra.mxu0 0
    %167 = vmatpush.bf16.msra.mxu0 0
    %168 = vmatpush.bf16.msra.mxu0 0
    %169 = vmatpush.bf16.msra.mxu0 0
    %170 = vmatpush.bf16.msra.mxu0 0
    %171 = vmatpush.bf16.msra.mxu0 0
    %172 = vmatpush.bf16.msra.mxu0 %v116
    %173 = vmatpush.bf16.msra.mxu0 %v113
    %174 = vmatmul.bf16.gmra.mxu0 %v126
    %v175 = vpop.f32.mrf.mxu0
    %v176 = vadd.f32 0.0, %v175
    %v177 = vpop.f32.mrf.mxu0
    %v178 = vadd.f32 0.0, %v177
    %179 = vmatmul.bf16.gmra.mxu0 %v129
    %v180 = vpop.f32.mrf.mxu0
    %v181 = vadd.f32 0.0, %v180
    %v182 = vpop.f32.mrf.mxu0
    %v183 = vadd.f32 0.0, %v182
    %184 = vmatmul.bf16.gmra.mxu0 %v132
    %v185 = vpop.f32.mrf.mxu0
    %v186 = vadd.f32 0.0, %v185
    %v187 = vpop.f32.mrf.mxu0
    %v188 = vadd.f32 0.0, %v187
    %189 = vmatmul.bf16.gmra.mxu0 %v135
    %v190 = vpop.f32.mrf.mxu0
    %v191 = vadd.f32 0.0, %v190
    %v192 = vpop.f32.mrf.mxu0
    %v193 = vadd.f32 0.0, %v192
    %194 = vdwg.mxu0
    %195 = vmatpush.bf16.msra.mxu0 0
    %196 = vmatpush.bf16.msra.mxu0 0
    %197 = vmatpush.bf16.msra.mxu0 0
    %198 = vmatpush.bf16.msra.mxu0 0
    %199 = vmatpush.bf16.msra.mxu0 0
    %200 = vmatpush.bf16.msra.mxu0 0
    %201 = vmatpush.bf16.msra.mxu0 %v117
    %202 = vmatpush.bf16.msra.mxu0 %v114
    %203 = vmatmul.bf16.gmra.mxu0 %v126
    %v204 = vpop.f32.mrf.mxu0
    %v205 = vadd.f32 0.0, %v204
    %v206 = vpop.f32.mrf.mxu0
    %v207 = vadd.f32 0.0, %v206
    %208 = vmatmul.bf16.gmra.mxu0 %v129
    %v209 = vpop.f32.mrf.mxu0
    %v210 = vadd.f32 0.0, %v209
    %v211 = vpop.f32.mrf.mxu0
    %v212 = vadd.f32 0.0, %v211
    %213 = vmatmul.bf16.gmra.mxu0 %v132
    %v214 = vpop.f32.mrf.mxu0
    %v215 = vadd.f32 0.0, %v214
    %v216 = vpop.f32.mrf.mxu0
    %v217 = vadd.f32 0.0, %v216
    %218 = vmatmul.bf16.gmra.mxu0 %v135
    %v219 = vpop.f32.mrf.mxu0
    %v220 = vadd.f32 0.0, %v219
    %v221 = vpop.f32.mrf.mxu0
    %v222 = vadd.f32 0.0, %v221
    %223 = vdwg.mxu0
    %v224 = vpack.c.bf16 %v176, %v147
    %v225 = vpack.c.bf16 %v205, %v205
    %v226 = vpack.c.bf16 %v178, %v149
    %v227 = vpack.c.bf16 %v207, %v207
    %v228 = vpack.c.bf16 %v181, %v152
    %v229 = vpack.c.bf16 %v210, %v210
    %v230 = vpack.c.bf16 %v183, %v154
    %v231 = vpack.c.bf16 %v212, %v212
    %v232 = vpack.c.bf16 %v186, %v157
    %v233 = vpack.c.bf16 %v215, %v215
    %v234 = vpack.c.bf16 %v188, %v159
    %v235 = vpack.c.bf16 %v217, %v217
    %v236 = vpack.c.bf16 %v191, %v162
    %v237 = vpack.c.bf16 %v220, %v220
    %v238 = vpack.c.bf16 %v193, %v164
    %v239 = vpack.c.bf16 %v222, %v222
    %240 = vst [vmem:[#allocation2] sm:$0xff] %v224
    %241 = vst [vmem:[#allocation2 + $0x8] sm:$0xf] %v225
    %242 = vst [vmem:[#allocation2 + $0xc] sm:$0xff] %v226
    %243 = vst [vmem:[#allocation2 + $0x14] sm:$0xf] %v227
    %244 = vst [vmem:[#allocation2 + $0x18] sm:$0xff] %v228
    %245 = vst [vmem:[#allocation2 + $0x20] sm:$0xf] %v229
    %246 = vst [vmem:[#allocation2 + $0x24] sm:$0xff] %v230
    %247 = vst [vmem:[#allocation2 + $0x2c] sm:$0xf] %v231
    %248 = vst [vmem:[#allocation2 + $0x30] sm:$0xff] %v232
    %249 = vst [vmem:[#allocation2 + $0x38] sm:$0xf] %v233
    %250 = vst [vmem:[#allocation2 + $0x3c] sm:$0xff] %v234
    %251 = vst [vmem:[#allocation2 + $0x44] sm:$0xf] %v235
    %252 = vst [vmem:[#allocation2 + $0x48] sm:$0xff] %v236
    %253 = vst [vmem:[#allocation2 + $0x50] sm:$0xf] %v237
    %254 = vst [vmem:[#allocation2 + $0x54] sm:$0xff] %v238
    %255 = vst [vmem:[#allocation2 + $0x5c] sm:$0xf] %v239
    // Predicated region
    $region14: #{tpu_custom_call.1} parent=1 // pred_check
      _
    $region15: #{tpu_custom_call.1} parent=1 // pred_check_branch
      %257 = sbr.rel (0) target = $region17
    $region16: #{tpu_custom_call.1} parent=1 // pred_region
      %259 = vsyncadd [#allocation3], 0
      %s260 = sshll.u32 [#allocation2], 4
      %s261 = int_to_ptr.vmem [resolvable:$true] %s260
      %s262 = sshll.u32 %s3, 4
      %s263 = int_to_ptr.hbm [resolvable:$true] %s262
      %268 = dma.vmem_to_hbm [thread:$0]  %s261, 1536, %s263, [#allocation3], 192, 192, 12
    $region17: #{tpu_custom_call.1} parent=1 // pred_fallthru
      _
    // Predicated region
    $region18: #{tpu_custom_call.1} parent=1 // pred_check
      _
    $region19: #{tpu_custom_call.1} parent=1 // pred_check_branch
      %270 = sbr.rel (0) target = $region21
    $region20: #{tpu_custom_call.1} parent=1 // pred_region
      %272 = dma.done [#allocation3], 1536
    $region21: #{tpu_custom_call.1} parent=1 // pred_fallthru
      _
    %273 = vsyncpa [#allocation3], 1

</llo_original>
